<compile_context>
chip_gen: v6e
topology: v6e:2x2x1
jax: 0.10.0
libtpu: 0.0.40
codegen_flags: <defaults>
</compile_context>

<pallas_src>
import jax
import jax.numpy as jnp
from jax.experimental import pallas as pl
from jax.experimental.pallas import tpu as pltpu


def _glove_kernel(cg_ref, xg_ref, bc_ref, bx_ref, o_ref):
    # cg_ref, xg_ref : (Dp, TB) f32   -- gathered embeddings, batch on lanes
    # bc_ref, bx_ref : (1, TB)  f32   -- gathered biases, lane-dense
    # o_ref          : (1, TB)  f32   -- lane-dense output tile
    dot = jnp.sum(cg_ref[...] * xg_ref[...], axis=0, keepdims=True)  # (1, TB)
    o_ref[...] = dot + bc_ref[...] + bx_ref[...]


def glove_forward(indices, w_center, w_contex, b_center, b_contex, *, tb=512):
    """indices: (B, 2) int; w_*: (V, D) f32; b_*: (V,) f32  ->  (B,) f32."""
    B = indices.shape[0]
    V, D = w_center.shape

    center_idx = indices[:, 0].astype(jnp.int32)
    context_idx = indices[:, 1].astype(jnp.int32)

    # ---- wrapper-side batched gathers (single XLA gather, not per-row DMA) ----
    cg = jnp.take(w_center, center_idx, axis=0).astype(jnp.float32)   # (B, D)
    xg = jnp.take(w_contex, context_idx, axis=0).astype(jnp.float32)  # (B, D)
    bc = jnp.take(b_center, center_idx).astype(jnp.float32)           # (B,)
    bx = jnp.take(b_contex, context_idx).astype(jnp.float32)          # (B,)

    # Pad embedding dim to a multiple of 8 (sublane axis); zeros don't change
    # the dot.  The lane axis (batch) is always fully dense.
    Dp = ((D + 7) // 8) * 8
    if Dp != D:
        cg = jnp.pad(cg, ((0, 0), (0, Dp - D)))
        xg = jnp.pad(xg, ((0, 0), (0, Dp - D)))

    # Batch tiling: TB (multiple of 128) elements per grid step on the lanes.
    tb = ((tb + 127) // 128) * 128
    b_round128 = ((B + 127) // 128) * 128
    TB = min(tb, b_round128)
    Bp = ((B + TB - 1) // TB) * TB

    # Lay the batch out on the lane axis: (Dp, Bp) / (1, Bp).
    cgT = cg.T  # (Dp, B)
    xgT = xg.T
    bc2 = bc[None, :]  # (1, B)
    bx2 = bx[None, :]
    if Bp != B:
        pad = Bp - B
        cgT = jnp.pad(cgT, ((0, 0), (0, pad)))
        xgT = jnp.pad(xgT, ((0, 0), (0, pad)))
        bc2 = jnp.pad(bc2, ((0, 0), (0, pad)))
        bx2 = jnp.pad(bx2, ((0, 0), (0, pad)))

    grid_spec = pltpu.PrefetchScalarGridSpec(
        num_scalar_prefetch=0,
        grid=(Bp // TB,),
        in_specs=[
            pl.BlockSpec((Dp, TB), lambda i: (0, i)),  # gathered center rows
            pl.BlockSpec((Dp, TB), lambda i: (0, i)),  # gathered context rows
            pl.BlockSpec((1, TB), lambda i: (0, i)),   # gathered center biases
            pl.BlockSpec((1, TB), lambda i: (0, i)),   # gathered context biases
        ],
        out_specs=pl.BlockSpec((1, TB), lambda i: (0, i)),
    )

    out = pl.pallas_call(
        _glove_kernel,
        out_shape=jax.ShapeDtypeStruct((1, Bp), jnp.float32),
        grid_spec=grid_spec,
        compiler_params=pltpu.CompilerParams(
            dimension_semantics=("parallel",)),  # independent tiles -> megacore
    )(cgT, xgT, bc2, bx2)

    return out[0, :B]


if __name__ == "__main__":
    # Small, deterministic synthetic setup (no checkpoint loading).
    V, D, B = 1024, 128, 512   # vocab, embedding dim, batch of (center, context)

    key = jax.random.PRNGKey(0)
    k1, k2, k3, k4, k5 = jax.random.split(key, 5)
    w_center = (jax.random.normal(k1, (V, D)) * 0.1).astype(jnp.float32)
    w_contex = (jax.random.normal(k2, (V, D)) * 0.1).astype(jnp.float32)
    b_center = (jax.random.normal(k3, (V,)) * 0.1).astype(jnp.float32)
    b_contex = (jax.random.normal(k4, (V,)) * 0.1).astype(jnp.float32)
    indices = jax.random.randint(k5, (B, 2), 0, V, dtype=jnp.int32)

    fwd = jax.jit(glove_forward)
    out = jax.block_until_ready(fwd(indices, w_center, w_contex,
                                    b_center, b_contex))

    # Pure-JAX reference of the torch forward semantics.
    ref = (jnp.sum(w_center[indices[:, 0]] * w_contex[indices[:, 1]], axis=-1)
           + b_center[indices[:, 0]] + b_contex[indices[:, 1]])
    assert out.shape == (B,)
    assert jnp.allclose(out, ref, atol=1e-5, rtol=1e-5)

    print("KERNEL_OK")
</pallas_src>

<mosaic_0001>
module attributes {stable_mosaic.version = 11 : i64} {
  func.func @_glove_kernel(%arg0: i32, %arg1: memref<128x512xf32, #tpu.memory_space<vmem>>, %arg2: memref<128x512xf32, #tpu.memory_space<vmem>>, %arg3: memref<1x512xf32, #tpu.memory_space<vmem>>, %arg4: memref<1x512xf32, #tpu.memory_space<vmem>>, %arg5: memref<1x512xf32, #tpu.memory_space<vmem>>) attributes {dimension_semantics = [#tpu.dimension_semantics<parallel>], iteration_bounds = array<i64: 1>, scalar_prefetch = 0 : i64, scratch_operands = 0 : i64, tpu.core_type = #tpu.core_type<tc>, window_params = [{transform_indices = @transform_0, window_bounds = array<i64: 128, 512>}, {transform_indices = @transform_1, window_bounds = array<i64: 128, 512>}, {transform_indices = @transform_2, window_bounds = array<i64: 1, 512>}, {transform_indices = @transform_3, window_bounds = array<i64: 1, 512>}, {transform_indices = @transform_4, window_bounds = array<i64: 1, 512>}]} {
    %c0 = arith.constant 0 : index
    %c0_0 = arith.constant 0 : index
    %0 = vector.load %arg1[%c0, %c0_0] : memref<128x512xf32, #tpu.memory_space<vmem>>, vector<128x512xf32>
    %c0_1 = arith.constant 0 : index
    %c0_2 = arith.constant 0 : index
    %1 = vector.load %arg2[%c0_1, %c0_2] : memref<128x512xf32, #tpu.memory_space<vmem>>, vector<128x512xf32>
    %2 = arith.mulf %0, %1 : vector<128x512xf32>
    %cst = arith.constant dense<0.000000e+00> : vector<512xf32>
    %3 = vector.multi_reduction <add>, %2, %cst [0] : vector<128x512xf32> to vector<512xf32>
    %4 = vector.shape_cast %3 : vector<512xf32> to vector<1x512xf32>
    %c0_3 = arith.constant 0 : index
    %c0_4 = arith.constant 0 : index
    %5 = vector.load %arg3[%c0_3, %c0_4] : memref<1x512xf32, #tpu.memory_space<vmem>>, vector<1x512xf32>
    %6 = arith.addf %4, %5 : vector<1x512xf32>
    %c0_5 = arith.constant 0 : index
    %c0_6 = arith.constant 0 : index
    %7 = vector.load %arg4[%c0_5, %c0_6] : memref<1x512xf32, #tpu.memory_space<vmem>>, vector<1x512xf32>
    %8 = arith.addf %6, %7 : vector<1x512xf32>
    %c0_7 = arith.constant 0 : index
    %c0_8 = arith.constant 0 : index
    %9 = vector.load %arg5[%c0_7, %c0_8] : memref<1x512xf32, #tpu.memory_space<vmem>>, vector<1x512xf32>
    tpu.vector_store %arg5[%c0_7, %c0_8], %8 {strides = array<i32>} : memref<1x512xf32, #tpu.memory_space<vmem>>, vector<1x512xf32>,
    return
  }
  func.func @transform_0(%arg0: i32) -> (i32, i32) {
    %c0_i32 = arith.constant 0 : i32
    %c0_i32_0 = arith.constant 0 : i32
    return %c0_i32, %arg0 : i32, i32
  }
  func.func @transform_1(%arg0: i32) -> (i32, i32) {
    %c0_i32 = arith.constant 0 : i32
    %c0_i32_0 = arith.constant 0 : i32
    return %c0_i32, %arg0 : i32, i32
  }
  func.func @transform_2(%arg0: i32) -> (i32, i32) {
    %c0_i32 = arith.constant 0 : i32
    %c0_i32_0 = arith.constant 0 : i32
    return %c0_i32, %arg0 : i32, i32
  }
  func.func @transform_3(%arg0: i32) -> (i32, i32) {
    %c0_i32 = arith.constant 0 : i32
    %c0_i32_0 = arith.constant 0 : i32
    return %c0_i32, %arg0 : i32, i32
  }
  func.func @transform_4(%arg0: i32) -> (i32, i32) {
    %c0_i32 = arith.constant 0 : i32
    %c0_i32_0 = arith.constant 0 : i32
    return %c0_i32, %arg0 : i32, i32
  }
}

</mosaic_0001>

<llo_original>
// kernel: glove_forward.1
$region0: #{glove_forward.1}
  #allocation0 [shape = 'u32[]', space=smem, size = 0x4, offset = 0x4, fixed_abs, tag = 'smem constant byte address 0x4 - core index']
  #allocation1 [shape = 'u32[144,128]{1,0:T(1,128)}', space=vmem, size = 0x12000, scoped, tag = 'internal scratch']
  %s0 = inlined_call_operand.vmem [shape: f32[128,512], index: 0, kind: input, shape index: {}]
  %s1 = inlined_call_operand.vmem [shape: f32[128,512], index: 1, kind: input, shape index: {}]
  %s2 = inlined_call_operand.vmem [shape: f32[1,512], index: 2, kind: input, shape index: {}]
  %s3 = inlined_call_operand.vmem [shape: f32[1,512], index: 3, kind: input, shape index: {}]
  %s4 = inlined_call_operand.hbm [shape: f32[1,512], index: 4, kind: output, shape index: {}]
  %s5 = sld [smem:[#allocation0]]
  $region26: #{glove_forward.1} parent=0
    _
  %s7 = ssub.s32 1, %s5
  %s8 = scalar_select 0, %s7, %s5
  $region1: #{glove_forward.1} parent=0
    #allocation2 [shape = 'u8[2048]{0}', space=vmem, size = 0x800, scoped, tag = 'output window, operand 0, single buffered']
    #allocation3 [shape = 's32[1]{0}', space=sflag, size = 0x4, scoped, tag = 'scoped memory for glove_forward.1']
    %9 = vsyncpa [#allocation3], 0
    // Predicated region
    $region2: #{glove_forward.1} parent=1 // pred_check
      _
    $region3: #{glove_forward.1} parent=1 // pred_check_branch
      %11 = sbr.rel (0) target = $region5
    $region4: #{glove_forward.1} parent=1 // pred_region
      _
    $region5: #{glove_forward.1} parent=1 // pred_fallthru
      _
    // Predicated region
    $region6: #{glove_forward.1} parent=1 // pred_check
      _
    $region7: #{glove_forward.1} parent=1 // pred_check_branch
      %13 = sbr.rel (0) target = $region9
    $region8: #{glove_forward.1} parent=1 // pred_region
      _
    $region9: #{glove_forward.1} parent=1 // pred_fallthru
      _
    // Predicated region
    $region10: #{glove_forward.1} parent=1 // pred_check
      _
    $region11: #{glove_forward.1} parent=1 // pred_check_branch
      %15 = sbr.rel (0) target = $region13
    $region12: #{glove_forward.1} parent=1 // pred_region
      _
    $region13: #{glove_forward.1} parent=1 // pred_fallthru
      _
    // Predicated region
    $region14: #{glove_forward.1} parent=1 // pred_check
      _
    $region15: #{glove_forward.1} parent=1 // pred_check_branch
      %17 = sbr.rel (0) target = $region17
    $region16: #{glove_forward.1} parent=1 // pred_region
      _
    $region17: #{glove_forward.1} parent=1 // pred_fallthru
      _
    %v18 = vld [vmem:[%s0] sm:$0xff]
    %v19 = vld [vmem:[%s0 + $0x8] sm:$0xff]
    %v20 = vld [vmem:[%s0 + $0x10] sm:$0xff]
    %v21 = vld [vmem:[%s0 + $0x18] sm:$0xff]
    %v22 = vld [vmem:[%s0 + $0x20] sm:$0xff]
    %v23 = vld [vmem:[%s0 + $0x28] sm:$0xff]
    %v24 = vld [vmem:[%s0 + $0x30] sm:$0xff]
    %v25 = vld [vmem:[%s0 + $0x38] sm:$0xff]
    %v26 = vld [vmem:[%s0 + $0x40] sm:$0xff]
    %v27 = vld [vmem:[%s0 + $0x48] sm:$0xff]
    %v28 = vld [vmem:[%s0 + $0x50] sm:$0xff]
    %v29 = vld [vmem:[%s0 + $0x58] sm:$0xff]
    %v30 = vld [vmem:[%s0 + $0x60] sm:$0xff]
    %v31 = vld [vmem:[%s0 + $0x68] sm:$0xff]
    %v32 = vld [vmem:[%s0 + $0x70] sm:$0xff]
    %v33 = vld [vmem:[%s0 + $0x78] sm:$0xff]
    %v34 = vld [vmem:[%s0 + $0x80] sm:$0xff]
    %v35 = vld [vmem:[%s0 + $0x88] sm:$0xff]
    %v36 = vld [vmem:[%s0 + $0x90] sm:$0xff]
    %v37 = vld [vmem:[%s0 + $0x98] sm:$0xff]
    %v38 = vld [vmem:[%s0 + $0xa0] sm:$0xff]
    %v39 = vld [vmem:[%s0 + $0xa8] sm:$0xff]
    %v40 = vld [vmem:[%s0 + $0xb0] sm:$0xff]
    %v41 = vld [vmem:[%s0 + $0xb8] sm:$0xff]
    %v42 = vld [vmem:[%s0 + $0xc0] sm:$0xff]
    %v43 = vld [vmem:[%s0 + $0xc8] sm:$0xff]
    %v44 = vld [vmem:[%s0 + $0xd0] sm:$0xff]
    %v45 = vld [vmem:[%s0 + $0xd8] sm:$0xff]
    %v46 = vld [vmem:[%s0 + $0xe0] sm:$0xff]
    %v47 = vld [vmem:[%s0 + $0xe8] sm:$0xff]
    %v48 = vld [vmem:[%s0 + $0xf0] sm:$0xff]
    %v49 = vld [vmem:[%s0 + $0xf8] sm:$0xff]
    %v50 = vld [vmem:[%s0 + $0x100] sm:$0xff]
    %v51 = vld [vmem:[%s0 + $0x108] sm:$0xff]
    %v52 = vld [vmem:[%s0 + $0x110] sm:$0xff]
    %v53 = vld [vmem:[%s0 + $0x118] sm:$0xff]
    %v54 = vld [vmem:[%s0 + $0x120] sm:$0xff]
    %v55 = vld [vmem:[%s0 + $0x128] sm:$0xff]
    %v56 = vld [vmem:[%s0 + $0x130] sm:$0xff]
    %v57 = vld [vmem:[%s0 + $0x138] sm:$0xff]
    %v58 = vld [vmem:[%s0 + $0x140] sm:$0xff]
    %v59 = vld [vmem:[%s0 + $0x148] sm:$0xff]
    %v60 = vld [vmem:[%s0 + $0x150] sm:$0xff]
    %v61 = vld [vmem:[%s0 + $0x158] sm:$0xff]
    %v62 = vld [vmem:[%s0 + $0x160] sm:$0xff]
    %v63 = vld [vmem:[%s0 + $0x168] sm:$0xff]
    %v64 = vld [vmem:[%s0 + $0x170] sm:$0xff]
    %v65 = vld [vmem:[%s0 + $0x178] sm:$0xff]
    %v66 = vld [vmem:[%s0 + $0x180] sm:$0xff]
    %v67 = vld [vmem:[%s0 + $0x188] sm:$0xff]
    %v68 = vld [vmem:[%s0 + $0x190] sm:$0xff]
    %v69 = vld [vmem:[%s0 + $0x198] sm:$0xff]
    %v70 = vld [vmem:[%s0 + $0x1a0] sm:$0xff]
    %v71 = vld [vmem:[%s0 + $0x1a8] sm:$0xff]
    %v72 = vld [vmem:[%s0 + $0x1b0] sm:$0xff]
    %v73 = vld [vmem:[%s0 + $0x1b8] sm:$0xff]
    %v74 = vld [vmem:[%s0 + $0x1c0] sm:$0xff]
    %v75 = vld [vmem:[%s0 + $0x1c8] sm:$0xff]
    %v76 = vld [vmem:[%s0 + $0x1d0] sm:$0xff]
    %v77 = vld [vmem:[%s0 + $0x1d8] sm:$0xff]
    %v78 = vld [vmem:[%s0 + $0x1e0] sm:$0xff]
    %v79 = vld [vmem:[%s0 + $0x1e8] sm:$0xff]
    %v80 = vld [vmem:[%s0 + $0x1f0] sm:$0xff]
    %v81 = vld [vmem:[%s0 + $0x1f8] sm:$0xff]
    %v82 = vld [vmem:[%s1] sm:$0xff]
    %v83 = vld [vmem:[%s1 + $0x8] sm:$0xff]
    %v84 = vld [vmem:[%s1 + $0x10] sm:$0xff]
    %v85 = vld [vmem:[%s1 + $0x18] sm:$0xff]
    %v86 = vld [vmem:[%s1 + $0x20] sm:$0xff]
    %v87 = vld [vmem:[%s1 + $0x28] sm:$0xff]
    %v88 = vld [vmem:[%s1 + $0x30] sm:$0xff]
    %v89 = vld [vmem:[%s1 + $0x38] sm:$0xff]
    %v90 = vld [vmem:[%s1 + $0x40] sm:$0xff]
    %v91 = vld [vmem:[%s1 + $0x48] sm:$0xff]
    %v92 = vld [vmem:[%s1 + $0x50] sm:$0xff]
    %v93 = vld [vmem:[%s1 + $0x58] sm:$0xff]
    %v94 = vld [vmem:[%s1 + $0x60] sm:$0xff]
    %v95 = vld [vmem:[%s1 + $0x68] sm:$0xff]
    %v96 = vld [vmem:[%s1 + $0x70] sm:$0xff]
    %v97 = vld [vmem:[%s1 + $0x78] sm:$0xff]
    %v98 = vld [vmem:[%s1 + $0x80] sm:$0xff]
    %v99 = vld [vmem:[%s1 + $0x88] sm:$0xff]
    %v100 = vld [vmem:[%s1 + $0x90] sm:$0xff]
    %v101 = vld [vmem:[%s1 + $0x98] sm:$0xff]
    %v102 = vld [vmem:[%s1 + $0xa0] sm:$0xff]
    %v103 = vld [vmem:[%s1 + $0xa8] sm:$0xff]
    %v104 = vld [vmem:[%s1 + $0xb0] sm:$0xff]
    %v105 = vld [vmem:[%s1 + $0xb8] sm:$0xff]
    %v106 = vld [vmem:[%s1 + $0xc0] sm:$0xff]
    %v107 = vld [vmem:[%s1 + $0xc8] sm:$0xff]
    %v108 = vld [vmem:[%s1 + $0xd0] sm:$0xff]
    %v109 = vld [vmem:[%s1 + $0xd8] sm:$0xff]
    %v110 = vld [vmem:[%s1 + $0xe0] sm:$0xff]
    %v111 = vld [vmem:[%s1 + $0xe8] sm:$0xff]
    %v112 = vld [vmem:[%s1 + $0xf0] sm:$0xff]
    %v113 = vld [vmem:[%s1 + $0xf8] sm:$0xff]
    %v114 = vld [vmem:[%s1 + $0x100] sm:$0xff]
    %v115 = vld [vmem:[%s1 + $0x108] sm:$0xff]
    %v116 = vld [vmem:[%s1 + $0x110] sm:$0xff]
    %v117 = vld [vmem:[%s1 + $0x118] sm:$0xff]
    %v118 = vld [vmem:[%s1 + $0x120] sm:$0xff]
    %v119 = vld [vmem:[%s1 + $0x128] sm:$0xff]
    %v120 = vld [vmem:[%s1 + $0x130] sm:$0xff]
    %v121 = vld [vmem:[%s1 + $0x138] sm:$0xff]
    %v122 = vld [vmem:[%s1 + $0x140] sm:$0xff]
    %v123 = vld [vmem:[%s1 + $0x148] sm:$0xff]
    %v124 = vld [vmem:[%s1 + $0x150] sm:$0xff]
    %v125 = vld [vmem:[%s1 + $0x158] sm:$0xff]
    %v126 = vld [vmem:[%s1 + $0x160] sm:$0xff]
    %v127 = vld [vmem:[%s1 + $0x168] sm:$0xff]
    %v128 = vld [vmem:[%s1 + $0x170] sm:$0xff]
    %v129 = vld [vmem:[%s1 + $0x178] sm:$0xff]
    %v130 = vld [vmem:[%s1 + $0x180] sm:$0xff]
    %v131 = vld [vmem:[%s1 + $0x188] sm:$0xff]
    %v132 = vld [vmem:[%s1 + $0x190] sm:$0xff]
    %v133 = vld [vmem:[%s1 + $0x198] sm:$0xff]
    %v134 = vld [vmem:[%s1 + $0x1a0] sm:$0xff]
    %v135 = vld [vmem:[%s1 + $0x1a8] sm:$0xff]
    %v136 = vld [vmem:[%s1 + $0x1b0] sm:$0xff]
    %v137 = vld [vmem:[%s1 + $0x1b8] sm:$0xff]
    %v138 = vld [vmem:[%s1 + $0x1c0] sm:$0xff]
    %v139 = vld [vmem:[%s1 + $0x1c8] sm:$0xff]
    %v140 = vld [vmem:[%s1 + $0x1d0] sm:$0xff]
    %v141 = vld [vmem:[%s1 + $0x1d8] sm:$0xff]
    %v142 = vld [vmem:[%s1 + $0x1e0] sm:$0xff]
    %v143 = vld [vmem:[%s1 + $0x1e8] sm:$0xff]
    %v144 = vld [vmem:[%s1 + $0x1f0] sm:$0xff]
    %v145 = vld [vmem:[%s1 + $0x1f8] sm:$0xff]
    %v146 = vmul.f32 %v18, %v82
    %v147 = vmul.f32 %v19, %v83
    %v148 = vmul.f32 %v20, %v84
    %v149 = vmul.f32 %v21, %v85
    %v150 = vmul.f32 %v22, %v86
    %v151 = vmul.f32 %v23, %v87
    %v152 = vmul.f32 %v24, %v88
    %v153 = vmul.f32 %v25, %v89
    %v154 = vmul.f32 %v26, %v90
    %v155 = vmul.f32 %v27, %v91
    %v156 = vmul.f32 %v28, %v92
    %v157 = vmul.f32 %v29, %v93
    %v158 = vmul.f32 %v30, %v94
    %v159 = vmul.f32 %v31, %v95
    %v160 = vmul.f32 %v32, %v96
    %v161 = vmul.f32 %v33, %v97
    %v162 = vmul.f32 %v34, %v98
    %v163 = vmul.f32 %v35, %v99
    %v164 = vmul.f32 %v36, %v100
    %v165 = vmul.f32 %v37, %v101
    %v166 = vmul.f32 %v38, %v102
    %v167 = vmul.f32 %v39, %v103
    %v168 = vmul.f32 %v40, %v104
    %v169 = vmul.f32 %v41, %v105
    %v170 = vmul.f32 %v42, %v106
    %v171 = vmul.f32 %v43, %v107
    %v172 = vmul.f32 %v44, %v108
    %v173 = vmul.f32 %v45, %v109
    %v174 = vmul.f32 %v46, %v110
    %v175 = vmul.f32 %v47, %v111
    %v176 = vmul.f32 %v48, %v112
    %v177 = vmul.f32 %v49, %v113
    %v178 = vmul.f32 %v50, %v114
    %v179 = vmul.f32 %v51, %v115
    %v180 = vmul.f32 %v52, %v116
    %v181 = vmul.f32 %v53, %v117
    %v182 = vmul.f32 %v54, %v118
    %v183 = vmul.f32 %v55, %v119
    %v184 = vmul.f32 %v56, %v120
    %v185 = vmul.f32 %v57, %v121
    %v186 = vmul.f32 %v58, %v122
    %v187 = vmul.f32 %v59, %v123
    %v188 = vmul.f32 %v60, %v124
    %v189 = vmul.f32 %v61, %v125
    %v190 = vmul.f32 %v62, %v126
    %v191 = vmul.f32 %v63, %v127
    %v192 = vmul.f32 %v64, %v128
    %v193 = vmul.f32 %v65, %v129
    %v194 = vmul.f32 %v66, %v130
    %v195 = vmul.f32 %v67, %v131
    %v196 = vmul.f32 %v68, %v132
    %v197 = vmul.f32 %v69, %v133
    %v198 = vmul.f32 %v70, %v134
    %v199 = vmul.f32 %v71, %v135
    %v200 = vmul.f32 %v72, %v136
    %v201 = vmul.f32 %v73, %v137
    %v202 = vmul.f32 %v74, %v138
    %v203 = vmul.f32 %v75, %v139
    %v204 = vmul.f32 %v76, %v140
    %v205 = vmul.f32 %v77, %v141
    %v206 = vmul.f32 %v78, %v142
    %v207 = vmul.f32 %v79, %v143
    %v208 = vmul.f32 %v80, %v144
    %v209 = vmul.f32 %v81, %v145
    %v210 = vadd.f32 %v146, %v150
    %v211 = vadd.f32 %v210, %v154
    %v212 = vadd.f32 %v211, %v158
    %v213 = vadd.f32 %v212, %v162
    %v214 = vadd.f32 %v213, %v166
    %v215 = vadd.f32 %v214, %v170
    %v216 = vadd.f32 %v215, %v174
    %v217 = vadd.f32 %v216, %v178
    %v218 = vadd.f32 %v217, %v182
    %v219 = vadd.f32 %v218, %v186
    %v220 = vadd.f32 %v219, %v190
    %v221 = vadd.f32 %v220, %v194
    %v222 = vadd.f32 %v221, %v198
    %v223 = vadd.f32 %v222, %v202
    %v224 = vadd.f32 %v223, %v206
    %v225 = vrot.slane %v224, 4
    %v226 = vadd.f32 %v224, %v225
    %v227 = vrot.slane %v226, 2
    %v228 = vadd.f32 %v226, %v227
    %v229 = vrot.slane %v228, 1
    %v230 = vadd.f32 %v228, %v229
    %v231 = vadd.f32 %v147, %v151
    %v232 = vadd.f32 %v231, %v155
    %v233 = vadd.f32 %v232, %v159
    %v234 = vadd.f32 %v233, %v163
    %v235 = vadd.f32 %v234, %v167
    %v236 = vadd.f32 %v235, %v171
    %v237 = vadd.f32 %v236, %v175
    %v238 = vadd.f32 %v237, %v179
    %v239 = vadd.f32 %v238, %v183
    %v240 = vadd.f32 %v239, %v187
    %v241 = vadd.f32 %v240, %v191
    %v242 = vadd.f32 %v241, %v195
    %v243 = vadd.f32 %v242, %v199
    %v244 = vadd.f32 %v243, %v203
    %v245 = vadd.f32 %v244, %v207
    %v246 = vrot.slane %v245, 4
    %v247 = vadd.f32 %v245, %v246
    %v248 = vrot.slane %v247, 2
    %v249 = vadd.f32 %v247, %v248
    %v250 = vrot.slane %v249, 1
    %v251 = vadd.f32 %v249, %v250
    %v252 = vadd.f32 %v148, %v152
    %v253 = vadd.f32 %v252, %v156
    %v254 = vadd.f32 %v253, %v160
    %v255 = vadd.f32 %v254, %v164
    %v256 = vadd.f32 %v255, %v168
    %v257 = vadd.f32 %v256, %v172
    %v258 = vadd.f32 %v257, %v176
    %v259 = vadd.f32 %v258, %v180
    %v260 = vadd.f32 %v259, %v184
    %v261 = vadd.f32 %v260, %v188
    %v262 = vadd.f32 %v261, %v192
    %v263 = vadd.f32 %v262, %v196
    %v264 = vadd.f32 %v263, %v200
    %v265 = vadd.f32 %v264, %v204
    %v266 = vadd.f32 %v265, %v208
    %v267 = vrot.slane %v266, 4
    %v268 = vadd.f32 %v266, %v267
    %v269 = vrot.slane %v268, 2
    %v270 = vadd.f32 %v268, %v269
    %v271 = vrot.slane %v270, 1
    %v272 = vadd.f32 %v270, %v271
    %v273 = vadd.f32 %v149, %v153
    %v274 = vadd.f32 %v273, %v157
    %v275 = vadd.f32 %v274, %v161
    %v276 = vadd.f32 %v275, %v165
    %v277 = vadd.f32 %v276, %v169
    %v278 = vadd.f32 %v277, %v173
    %v279 = vadd.f32 %v278, %v177
    %v280 = vadd.f32 %v279, %v181
    %v281 = vadd.f32 %v280, %v185
    %v282 = vadd.f32 %v281, %v189
    %v283 = vadd.f32 %v282, %v193
    %v284 = vadd.f32 %v283, %v197
    %v285 = vadd.f32 %v284, %v201
    %v286 = vadd.f32 %v285, %v205
    %v287 = vadd.f32 %v286, %v209
    %v288 = vrot.slane %v287, 4
    %v289 = vadd.f32 %v287, %v288
    %v290 = vrot.slane %v289, 2
    %v291 = vadd.f32 %v289, %v290
    %v292 = vrot.slane %v291, 1
    %v293 = vadd.f32 %v291, %v292
    %v294 = vld [vmem:[%s2] sm:$0xf]
    %v296 = vlaneseq
    %v297 = vshrl.u32 %v296, 7
    %v298 = vsub.s32 0, %v297
    %v299 = vrot.slane %v294, %v298
    %v300 = vlaneseq
    %v301 = vshrl.u32 %v300, 7
    %v302 = vsub.s32 1, %v301
    %v303 = vrot.slane %v294, %v302
    %v304 = vlaneseq
    %v305 = vshrl.u32 %v304, 7
    %v306 = vsub.s32 2, %v305
    %v307 = vrot.slane %v294, %v306
    %v308 = vlaneseq
    %v309 = vshrl.u32 %v308, 7
    %v310 = vsub.s32 3, %v309
    %v311 = vrot.slane %v294, %v310
    %v316 = vadd.f32 %v230, %v299
    %v317 = vadd.f32 %v251, %v303
    %v318 = vadd.f32 %v272, %v307
    %v319 = vadd.f32 %v293, %v311
    %v320 = vld [vmem:[%s3] sm:$0xf]
    %v322 = vlaneseq
    %v323 = vshrl.u32 %v322, 7
    %v324 = vsub.s32 0, %v323
    %v325 = vrot.slane %v320, %v324
    %v326 = vlaneseq
    %v327 = vshrl.u32 %v326, 7
    %v328 = vsub.s32 1, %v327
    %v329 = vrot.slane %v320, %v328
    %v330 = vlaneseq
    %v331 = vshrl.u32 %v330, 7
    %v332 = vsub.s32 2, %v331
    %v333 = vrot.slane %v320, %v332
    %v334 = vlaneseq
    %v335 = vshrl.u32 %v334, 7
    %v336 = vsub.s32 3, %v335
    %v337 = vrot.slane %v320, %v336
    %v342 = vadd.f32 %v316, %v325
    %v343 = vadd.f32 %v317, %v329
    %v344 = vadd.f32 %v318, %v333
    %v345 = vadd.f32 %v319, %v337
    %v350 = vcombine.low %v342, %v343
    %v351 = vcombine.low %v344, %v345
    %v353 = vunpack.c.l.s4 1966171168
    %v354 = vunpack.c.0.s8 %v353
    %v355 = vlaneseq
    %v356 = vshrl.u32 %v355, 7
    %v357 = vsub.s32 %v354, %v356
    %v358 = vrot.slane %v350, %v357
    %v360 = vunpack.c.l.s4 1966171168
    %v361 = vunpack.c.0.s8 %v360
    %v362 = vlaneseq
    %v363 = vshrl.u32 %v362, 7
    %v364 = vsub.s32 %v361, %v363
    %v365 = vrot.slane %v351, %v364
    %v366 = vcombine.low %v358, %v365
    %v368 = vunpack.c.l.s4 1966171168
    %v369 = vunpack.c.0.s8 %v368
    %v370 = vlaneseq
    %v371 = vshrl.u32 %v370, 7
    %v372 = vsub.s32 %v369, %v371
    %v373 = vrot.slane %v366, %v372
    %v375 = vlaneseq
    %vm376 = vcmp.ge.s32.totalorder %v375, 0
    %vm377 = vcmp.lt.s32.totalorder %v375, 512
    %vm378 = vmand %vm376, %vm377
    %379 = vst.msk [vmem:[#allocation2] sm:$0xf] %vm378, %v373
    // Predicated region
    $region18: #{glove_forward.1} parent=1 // pred_check
      _
    $region19: #{glove_forward.1} parent=1 // pred_check_branch
      %381 = sbr.rel (0) target = $region21
    $region20: #{glove_forward.1} parent=1 // pred_region
      %s383 = ssub.s32 64, 64
      %384 = vsyncadd [#allocation3], %s383
      %s386 = sshll.u32 [#allocation2], 4
      %s387 = int_to_ptr.vmem [resolvable:$true] %s386
      %389 = dma.vmem_to_hbm [thread:$0]  %s387, 64, %s4, [#allocation3]
    $region21: #{glove_forward.1} parent=1 // pred_fallthru
      _
    // Predicated region
    $region22: #{glove_forward.1} parent=1 // pred_check
      _
    $region23: #{glove_forward.1} parent=1 // pred_check_branch
      %391 = sbr.rel (0) target = $region25
    $region24: #{glove_forward.1} parent=1 // pred_region
      %392 = dma.done [#allocation3], 64
    $region25: #{glove_forward.1} parent=1 // pred_fallthru
      _
    %393 = vsyncpa [#allocation3], 1

</llo_original>
